<compile_context>
chip_gen: v5e
topology: v5e:2x2
jax: 0.10.0
libtpu: 0.0.40
codegen_flags: <defaults>
</compile_context>

<pallas_src>
import jax
import jax.numpy as jnp
from jax import lax
from jax.experimental import pallas as pl
from jax.experimental.pallas import tpu as pltpu


def lstm_kernel(x_ref, wih_ref, whh_ref, b_ref, wlin_ref, blin_ref,
                out_ref, gx_scr):
    seq, B, _ = x_ref.shape
    H = whh_ref.shape[0]          # whh_ref is (H, 4H)

    # ---- pre-pass (off the serial chain): input projection + fused bias ----
    # input_size == 1  =>  x_t @ W_ih^T is an outer product -> broadcasted mul.
    # (seq, B, 1) * (1, 4H) + (1, 4H) -> (seq, B, 4H)
    gx_scr[...] = x_ref[...] * wih_ref[...] + b_ref[...]

    # Load recurrent weights once; they stay resident across the loop.
    w_hh = whh_ref[...]           # (H, 4H)

    # ---- sequential recurrence over time, h/c carried in registers ----
    def step(t, carry):
        h, c = carry
        # One MXU matmul per step: (B, H) @ (H, 4H) -> (B, 4H)
        gates = gx_scr[t] + jnp.dot(h, w_hh, preferred_element_type=jnp.float32)

        # Full-vreg nonlinearities (PyTorch gate order [i, f, g, o]).
        sig = jax.nn.sigmoid(gates)       # (B, 4H)
        th = jnp.tanh(gates)              # (B, 4H)

        i_g = sig[:, 0 * H:1 * H]
        f_g = sig[:, 1 * H:2 * H]
        g_g = th[:, 2 * H:3 * H]
        o_g = sig[:, 3 * H:4 * H]

        c_new = f_g * c + i_g * g_g
        h_new = o_g * jnp.tanh(c_new)
        return h_new, c_new

    h0 = jnp.zeros((B, H), jnp.float32)
    c0 = jnp.zeros((B, H), jnp.float32)
    h_last, _ = lax.fori_loop(0, seq, step, (h0, c0), unroll=True)

    # ---- final Linear(H, 1): lane reduction instead of N=1 MXU matmul ----
    out_ref[...] = (jnp.sum(h_last * wlin_ref[...], axis=-1, keepdims=True)
                    + blin_ref[...])


def lstm_forward(x, w_ih, w_hh, b_ih, b_hh, w_lin, b_lin):
    """x: (seq, B, 1) f32.  PyTorch-shaped params:
       w_ih (4H, 1), w_hh (4H, H), b_ih (4H,), b_hh (4H,),
       w_lin (1, H), b_lin (1,)."""
    seq, B, _ = x.shape
    H = w_hh.shape[1]

    # Glue: lay weights out for plain row-major use inside the kernel.
    wih_row = jnp.transpose(w_ih).astype(jnp.float32)             # (1, 4H)
    whh_t = jnp.transpose(w_hh).astype(jnp.float32)               # (H, 4H)
    b = (b_ih + b_hh).reshape(1, 4 * H).astype(jnp.float32)       # (1, 4H)
    wlin_row = w_lin.reshape(1, H).astype(jnp.float32)            # (1, H)
    blin = b_lin.reshape(1, 1).astype(jnp.float32)                # (1, 1)

    vmem = pl.BlockSpec(memory_space=pltpu.MemorySpace.VMEM)

    # Single invocation (no grid): everything fits comfortably in VMEM at
    # these sizes.  For very long sequences, chunk x over time instead
    # (see review notes) -- not needed at seq=8.
    return pl.pallas_call(
        lstm_kernel,
        out_shape=jax.ShapeDtypeStruct((B, 1), jnp.float32),
        in_specs=[vmem] * 6,
        out_specs=vmem,
        scratch_shapes=[
            pltpu.VMEM((seq, B, 4 * H), jnp.float32),   # precomputed x-gates
        ],
    )(x.astype(jnp.float32), wih_row, whh_t, b, wlin_row, blin)


def lstm_reference(x, w_ih, w_hh, b_ih, b_hh, w_lin, b_lin):
    """Pure-JAX reference matching torch.nn.LSTM + nn.Linear semantics."""
    _, B, _ = x.shape
    H = w_hh.shape[1]

    def step(carry, x_t):
        h, c = carry
        gates = x_t @ w_ih.T + h @ w_hh.T + b_ih + b_hh
        i = jax.nn.sigmoid(gates[:, 0 * H:1 * H])
        f = jax.nn.sigmoid(gates[:, 1 * H:2 * H])
        g = jnp.tanh(gates[:, 2 * H:3 * H])
        o = jax.nn.sigmoid(gates[:, 3 * H:4 * H])
        c = f * c + i * g
        h = o * jnp.tanh(c)
        return (h, c), h

    h0 = jnp.zeros((B, H), jnp.float32)
    c0 = jnp.zeros((B, H), jnp.float32)
    (_, _), hs = jax.lax.scan(step, (h0, c0), x)
    h_last = hs[-1]
    return h_last @ w_lin.T + b_lin


if __name__ == "__main__":
    SEQ, B, H = 8, 8, 32   # seq_len=8, batch=8, hidden_size=32, input_size=1

    key = jax.random.PRNGKey(0)
    k = jax.random.split(key, 7)
    bound = 1.0 / jnp.sqrt(H)

    x = jax.random.normal(k[0], (SEQ, B, 1), jnp.float32)
    w_ih = jax.random.uniform(k[1], (4 * H, 1), jnp.float32, -bound, bound)
    w_hh = jax.random.uniform(k[2], (4 * H, H), jnp.float32, -bound, bound)
    b_ih = jax.random.uniform(k[3], (4 * H,), jnp.float32, -bound, bound)
    b_hh = jax.random.uniform(k[4], (4 * H,), jnp.float32, -bound, bound)
    w_lin = jax.random.uniform(k[5], (1, H), jnp.float32, -bound, bound)
    b_lin = jax.random.uniform(k[6], (1,), jnp.float32, -bound, bound)

    out = lstm_forward(x, w_ih, w_hh, b_ih, b_hh, w_lin, b_lin)
    out = jax.block_until_ready(out)

    ref = lstm_reference(x, w_ih, w_hh, b_ih, b_hh, w_lin, b_lin)
    assert out.shape == (B, 1), out.shape
    assert jnp.allclose(out, ref, atol=1e-5, rtol=1e-5), (out, ref)

    print("KERNEL_OK")
</pallas_src>

<mosaic_0001>
module attributes {stable_mosaic.version = 11 : i64} {
  func.func @lstm_kernel(%arg0: memref<8x8x1xf32, #tpu.memory_space<vmem>>, %arg1: memref<1x128xf32, #tpu.memory_space<vmem>>, %arg2: memref<32x128xf32, #tpu.memory_space<vmem>>, %arg3: memref<1x128xf32, #tpu.memory_space<vmem>>, %arg4: memref<1x32xf32, #tpu.memory_space<vmem>>, %arg5: memref<1x1xf32, #tpu.memory_space<vmem>>, %arg6: memref<8x1xf32, #tpu.memory_space<vmem>>, %arg7: memref<8x8x128xf32, #tpu.memory_space<vmem>>) attributes {dimension_semantics = [], scalar_prefetch = 0 : i64, scratch_operands = 1 : i64, tpu.core_type = #tpu.core_type<tc>} {
    %c0 = arith.constant 0 : index
    %c0_0 = arith.constant 0 : index
    %c0_1 = arith.constant 0 : index
    %0 = vector.load %arg0[%c0, %c0_0, %c0_1] : memref<8x8x1xf32, #tpu.memory_space<vmem>>, vector<8x8x1xf32>
    %c0_2 = arith.constant 0 : index
    %c0_3 = arith.constant 0 : index
    %1 = vector.load %arg1[%c0_2, %c0_3] : memref<1x128xf32, #tpu.memory_space<vmem>>, vector<1x128xf32>
    %2 = vector.shape_cast %1 : vector<1x128xf32> to vector<1x1x128xf32>
    %3 = vector.broadcast %0 : vector<8x8x1xf32> to vector<8x8x128xf32>
    %4 = vector.broadcast %2 : vector<1x1x128xf32> to vector<8x8x128xf32>
    %5 = arith.mulf %3, %4 : vector<8x8x128xf32>
    %c0_4 = arith.constant 0 : index
    %c0_5 = arith.constant 0 : index
    %6 = vector.load %arg3[%c0_4, %c0_5] : memref<1x128xf32, #tpu.memory_space<vmem>>, vector<1x128xf32>
    %7 = vector.shape_cast %6 : vector<1x128xf32> to vector<1x1x128xf32>
    %8 = vector.broadcast %7 : vector<1x1x128xf32> to vector<8x8x128xf32>
    %9 = arith.addf %5, %8 : vector<8x8x128xf32>
    %c0_6 = arith.constant 0 : index
    %c0_7 = arith.constant 0 : index
    %c0_8 = arith.constant 0 : index
    %10 = vector.load %arg7[%c0_6, %c0_7, %c0_8] : memref<8x8x128xf32, #tpu.memory_space<vmem>>, vector<8x8x128xf32>
    tpu.vector_store %arg7[%c0_6, %c0_7, %c0_8], %9 {strides = array<i32>} : memref<8x8x128xf32, #tpu.memory_space<vmem>>, vector<8x8x128xf32>,
    %c0_9 = arith.constant 0 : index
    %c0_10 = arith.constant 0 : index
    %11 = vector.load %arg2[%c0_9, %c0_10] : memref<32x128xf32, #tpu.memory_space<vmem>>, vector<32x128xf32>
    %cst = arith.constant 0.000000e+00 : f32
    %12 = vector.broadcast %cst : f32 to vector<8x32xf32>
    %cst_11 = arith.constant 0.000000e+00 : f32
    %13 = vector.broadcast %cst_11 : f32 to vector<8x32xf32>
    %c0_i32 = arith.constant 0 : i32
    %14 = arith.index_cast %c0_i32 : i32 to index
    %c0_12 = arith.constant 0 : index
    %c0_13 = arith.constant 0 : index
    %15 = vector.load %arg7[%14, %c0_12, %c0_13] : memref<8x8x128xf32, #tpu.memory_space<vmem>>, vector<1x8x128xf32>
    %16 = vector.shape_cast %15 : vector<1x8x128xf32> to vector<8x128xf32>
    %cst_14 = arith.constant dense<0.000000e+00> : vector<8x128xf32>
    %17 = tpu.matmul %12, %11, %cst_14 {dimension_numbers = #tpu.dot_dimension_numbers<[1], [0], [0], [1], [0, 0, 1, 1], [], []>} : vector<8x32xf32>, vector<32x128xf32>, vector<8x128xf32> -> vector<8x128xf32>
    %18 = arith.addf %16, %17 : vector<8x128xf32>
    %19 = arith.negf %18 : vector<8x128xf32>
    %20 = math.exp %19 : vector<8x128xf32>
    %cst_15 = arith.constant 1.000000e+00 : f32
    %21 = vector.broadcast %cst_15 : f32 to vector<8x128xf32>
    %22 = arith.addf %21, %20 : vector<8x128xf32>
    %23 = arith.divf %21, %22 : vector<8x128xf32>
    %24 = math.tanh %18 : vector<8x128xf32>
    %25 = vector.extract_strided_slice %23 {offsets = [0, 0], sizes = [8, 32], strides = [1, 1]} : vector<8x128xf32> to vector<8x32xf32>
    %26 = vector.extract_strided_slice %23 {offsets = [0, 32], sizes = [8, 32], strides = [1, 1]} : vector<8x128xf32> to vector<8x32xf32>
    %27 = vector.extract_strided_slice %24 {offsets = [0, 64], sizes = [8, 32], strides = [1, 1]} : vector<8x128xf32> to vector<8x32xf32>
    %28 = vector.extract_strided_slice %23 {offsets = [0, 96], sizes = [8, 32], strides = [1, 1]} : vector<8x128xf32> to vector<8x32xf32>
    %29 = arith.mulf %26, %13 : vector<8x32xf32>
    %30 = arith.mulf %25, %27 : vector<8x32xf32>
    %31 = arith.addf %29, %30 : vector<8x32xf32>
    %32 = math.tanh %31 : vector<8x32xf32>
    %33 = arith.mulf %28, %32 : vector<8x32xf32>
    %c1_i32 = arith.constant 1 : i32
    %34 = arith.index_cast %c1_i32 : i32 to index
    %c0_16 = arith.constant 0 : index
    %c0_17 = arith.constant 0 : index
    %35 = vector.load %arg7[%34, %c0_16, %c0_17] : memref<8x8x128xf32, #tpu.memory_space<vmem>>, vector<1x8x128xf32>
    %36 = vector.shape_cast %35 : vector<1x8x128xf32> to vector<8x128xf32>
    %cst_18 = arith.constant dense<0.000000e+00> : vector<8x128xf32>
    %37 = tpu.matmul %33, %11, %cst_18 {dimension_numbers = #tpu.dot_dimension_numbers<[1], [0], [0], [1], [0, 0, 1, 1], [], []>} : vector<8x32xf32>, vector<32x128xf32>, vector<8x128xf32> -> vector<8x128xf32>
    %38 = arith.addf %36, %37 : vector<8x128xf32>
    %39 = arith.negf %38 : vector<8x128xf32>
    %40 = math.exp %39 : vector<8x128xf32>
    %cst_19 = arith.constant 1.000000e+00 : f32
    %41 = vector.broadcast %cst_19 : f32 to vector<8x128xf32>
    %42 = arith.addf %41, %40 : vector<8x128xf32>
    %43 = arith.divf %41, %42 : vector<8x128xf32>
    %44 = math.tanh %38 : vector<8x128xf32>
    %45 = vector.extract_strided_slice %43 {offsets = [0, 0], sizes = [8, 32], strides = [1, 1]} : vector<8x128xf32> to vector<8x32xf32>
    %46 = vector.extract_strided_slice %43 {offsets = [0, 32], sizes = [8, 32], strides = [1, 1]} : vector<8x128xf32> to vector<8x32xf32>
    %47 = vector.extract_strided_slice %44 {offsets = [0, 64], sizes = [8, 32], strides = [1, 1]} : vector<8x128xf32> to vector<8x32xf32>
    %48 = vector.extract_strided_slice %43 {offsets = [0, 96], sizes = [8, 32], strides = [1, 1]} : vector<8x128xf32> to vector<8x32xf32>
    %49 = arith.mulf %46, %31 : vector<8x32xf32>
    %50 = arith.mulf %45, %47 : vector<8x32xf32>
    %51 = arith.addf %49, %50 : vector<8x32xf32>
    %52 = math.tanh %51 : vector<8x32xf32>
    %53 = arith.mulf %48, %52 : vector<8x32xf32>
    %c2_i32 = arith.constant 2 : i32
    %54 = arith.index_cast %c2_i32 : i32 to index
    %c0_20 = arith.constant 0 : index
    %c0_21 = arith.constant 0 : index
    %55 = vector.load %arg7[%54, %c0_20, %c0_21] : memref<8x8x128xf32, #tpu.memory_space<vmem>>, vector<1x8x128xf32>
    %56 = vector.shape_cast %55 : vector<1x8x128xf32> to vector<8x128xf32>
    %cst_22 = arith.constant dense<0.000000e+00> : vector<8x128xf32>
    %57 = tpu.matmul %53, %11, %cst_22 {dimension_numbers = #tpu.dot_dimension_numbers<[1], [0], [0], [1], [0, 0, 1, 1], [], []>} : vector<8x32xf32>, vector<32x128xf32>, vector<8x128xf32> -> vector<8x128xf32>
    %58 = arith.addf %56, %57 : vector<8x128xf32>
    %59 = arith.negf %58 : vector<8x128xf32>
    %60 = math.exp %59 : vector<8x128xf32>
    %cst_23 = arith.constant 1.000000e+00 : f32
    %61 = vector.broadcast %cst_23 : f32 to vector<8x128xf32>
    %62 = arith.addf %61, %60 : vector<8x128xf32>
    %63 = arith.divf %61, %62 : vector<8x128xf32>
    %64 = math.tanh %58 : vector<8x128xf32>
    %65 = vector.extract_strided_slice %63 {offsets = [0, 0], sizes = [8, 32], strides = [1, 1]} : vector<8x128xf32> to vector<8x32xf32>
    %66 = vector.extract_strided_slice %63 {offsets = [0, 32], sizes = [8, 32], strides = [1, 1]} : vector<8x128xf32> to vector<8x32xf32>
    %67 = vector.extract_strided_slice %64 {offsets = [0, 64], sizes = [8, 32], strides = [1, 1]} : vector<8x128xf32> to vector<8x32xf32>
    %68 = vector.extract_strided_slice %63 {offsets = [0, 96], sizes = [8, 32], strides = [1, 1]} : vector<8x128xf32> to vector<8x32xf32>
    %69 = arith.mulf %66, %51 : vector<8x32xf32>
    %70 = arith.mulf %65, %67 : vector<8x32xf32>
    %71 = arith.addf %69, %70 : vector<8x32xf32>
    %72 = math.tanh %71 : vector<8x32xf32>
    %73 = arith.mulf %68, %72 : vector<8x32xf32>
    %c3_i32 = arith.constant 3 : i32
    %74 = arith.index_cast %c3_i32 : i32 to index
    %c0_24 = arith.constant 0 : index
    %c0_25 = arith.constant 0 : index
    %75 = vector.load %arg7[%74, %c0_24, %c0_25] : memref<8x8x128xf32, #tpu.memory_space<vmem>>, vector<1x8x128xf32>
    %76 = vector.shape_cast %75 : vector<1x8x128xf32> to vector<8x128xf32>
    %cst_26 = arith.constant dense<0.000000e+00> : vector<8x128xf32>
    %77 = tpu.matmul %73, %11, %cst_26 {dimension_numbers = #tpu.dot_dimension_numbers<[1], [0], [0], [1], [0, 0, 1, 1], [], []>} : vector<8x32xf32>, vector<32x128xf32>, vector<8x128xf32> -> vector<8x128xf32>
    %78 = arith.addf %76, %77 : vector<8x128xf32>
    %79 = arith.negf %78 : vector<8x128xf32>
    %80 = math.exp %79 : vector<8x128xf32>
    %cst_27 = arith.constant 1.000000e+00 : f32
    %81 = vector.broadcast %cst_27 : f32 to vector<8x128xf32>
    %82 = arith.addf %81, %80 : vector<8x128xf32>
    %83 = arith.divf %81, %82 : vector<8x128xf32>
    %84 = math.tanh %78 : vector<8x128xf32>
    %85 = vector.extract_strided_slice %83 {offsets = [0, 0], sizes = [8, 32], strides = [1, 1]} : vector<8x128xf32> to vector<8x32xf32>
    %86 = vector.extract_strided_slice %83 {offsets = [0, 32], sizes = [8, 32], strides = [1, 1]} : vector<8x128xf32> to vector<8x32xf32>
    %87 = vector.extract_strided_slice %84 {offsets = [0, 64], sizes = [8, 32], strides = [1, 1]} : vector<8x128xf32> to vector<8x32xf32>
    %88 = vector.extract_strided_slice %83 {offsets = [0, 96], sizes = [8, 32], strides = [1, 1]} : vector<8x128xf32> to vector<8x32xf32>
    %89 = arith.mulf %86, %71 : vector<8x32xf32>
    %90 = arith.mulf %85, %87 : vector<8x32xf32>
    %91 = arith.addf %89, %90 : vector<8x32xf32>
    %92 = math.tanh %91 : vector<8x32xf32>
    %93 = arith.mulf %88, %92 : vector<8x32xf32>
    %c4_i32 = arith.constant 4 : i32
    %94 = arith.index_cast %c4_i32 : i32 to index
    %c0_28 = arith.constant 0 : index
    %c0_29 = arith.constant 0 : index
    %95 = vector.load %arg7[%94, %c0_28, %c0_29] : memref<8x8x128xf32, #tpu.memory_space<vmem>>, vector<1x8x128xf32>
    %96 = vector.shape_cast %95 : vector<1x8x128xf32> to vector<8x128xf32>
    %cst_30 = arith.constant dense<0.000000e+00> : vector<8x128xf32>
    %97 = tpu.matmul %93, %11, %cst_30 {dimension_numbers = #tpu.dot_dimension_numbers<[1], [0], [0], [1], [0, 0, 1, 1], [], []>} : vector<8x32xf32>, vector<32x128xf32>, vector<8x128xf32> -> vector<8x128xf32>
    %98 = arith.addf %96, %97 : vector<8x128xf32>
    %99 = arith.negf %98 : vector<8x128xf32>
    %100 = math.exp %99 : vector<8x128xf32>
    %cst_31 = arith.constant 1.000000e+00 : f32
    %101 = vector.broadcast %cst_31 : f32 to vector<8x128xf32>
    %102 = arith.addf %101, %100 : vector<8x128xf32>
    %103 = arith.divf %101, %102 : vector<8x128xf32>
    %104 = math.tanh %98 : vector<8x128xf32>
    %105 = vector.extract_strided_slice %103 {offsets = [0, 0], sizes = [8, 32], strides = [1, 1]} : vector<8x128xf32> to vector<8x32xf32>
    %106 = vector.extract_strided_slice %103 {offsets = [0, 32], sizes = [8, 32], strides = [1, 1]} : vector<8x128xf32> to vector<8x32xf32>
    %107 = vector.extract_strided_slice %104 {offsets = [0, 64], sizes = [8, 32], strides = [1, 1]} : vector<8x128xf32> to vector<8x32xf32>
    %108 = vector.extract_strided_slice %103 {offsets = [0, 96], sizes = [8, 32], strides = [1, 1]} : vector<8x128xf32> to vector<8x32xf32>
    %109 = arith.mulf %106, %91 : vector<8x32xf32>
    %110 = arith.mulf %105, %107 : vector<8x32xf32>
    %111 = arith.addf %109, %110 : vector<8x32xf32>
    %112 = math.tanh %111 : vector<8x32xf32>
    %113 = arith.mulf %108, %112 : vector<8x32xf32>
    %c5_i32 = arith.constant 5 : i32
    %114 = arith.index_cast %c5_i32 : i32 to index
    %c0_32 = arith.constant 0 : index
    %c0_33 = arith.constant 0 : index
    %115 = vector.load %arg7[%114, %c0_32, %c0_33] : memref<8x8x128xf32, #tpu.memory_space<vmem>>, vector<1x8x128xf32>
    %116 = vector.shape_cast %115 : vector<1x8x128xf32> to vector<8x128xf32>
    %cst_34 = arith.constant dense<0.000000e+00> : vector<8x128xf32>
    %117 = tpu.matmul %113, %11, %cst_34 {dimension_numbers = #tpu.dot_dimension_numbers<[1], [0], [0], [1], [0, 0, 1, 1], [], []>} : vector<8x32xf32>, vector<32x128xf32>, vector<8x128xf32> -> vector<8x128xf32>
    %118 = arith.addf %116, %117 : vector<8x128xf32>
    %119 = arith.negf %118 : vector<8x128xf32>
    %120 = math.exp %119 : vector<8x128xf32>
    %cst_35 = arith.constant 1.000000e+00 : f32
    %121 = vector.broadcast %cst_35 : f32 to vector<8x128xf32>
    %122 = arith.addf %121, %120 : vector<8x128xf32>
    %123 = arith.divf %121, %122 : vector<8x128xf32>
    %124 = math.tanh %118 : vector<8x128xf32>
    %125 = vector.extract_strided_slice %123 {offsets = [0, 0], sizes = [8, 32], strides = [1, 1]} : vector<8x128xf32> to vector<8x32xf32>
    %126 = vector.extract_strided_slice %123 {offsets = [0, 32], sizes = [8, 32], strides = [1, 1]} : vector<8x128xf32> to vector<8x32xf32>
    %127 = vector.extract_strided_slice %124 {offsets = [0, 64], sizes = [8, 32], strides = [1, 1]} : vector<8x128xf32> to vector<8x32xf32>
    %128 = vector.extract_strided_slice %123 {offsets = [0, 96], sizes = [8, 32], strides = [1, 1]} : vector<8x128xf32> to vector<8x32xf32>
    %129 = arith.mulf %126, %111 : vector<8x32xf32>
    %130 = arith.mulf %125, %127 : vector<8x32xf32>
    %131 = arith.addf %129, %130 : vector<8x32xf32>
    %132 = math.tanh %131 : vector<8x32xf32>
    %133 = arith.mulf %128, %132 : vector<8x32xf32>
    %c6_i32 = arith.constant 6 : i32
    %134 = arith.index_cast %c6_i32 : i32 to index
    %c0_36 = arith.constant 0 : index
    %c0_37 = arith.constant 0 : index
    %135 = vector.load %arg7[%134, %c0_36, %c0_37] : memref<8x8x128xf32, #tpu.memory_space<vmem>>, vector<1x8x128xf32>
    %136 = vector.shape_cast %135 : vector<1x8x128xf32> to vector<8x128xf32>
    %cst_38 = arith.constant dense<0.000000e+00> : vector<8x128xf32>
    %137 = tpu.matmul %133, %11, %cst_38 {dimension_numbers = #tpu.dot_dimension_numbers<[1], [0], [0], [1], [0, 0, 1, 1], [], []>} : vector<8x32xf32>, vector<32x128xf32>, vector<8x128xf32> -> vector<8x128xf32>
    %138 = arith.addf %136, %137 : vector<8x128xf32>
    %139 = arith.negf %138 : vector<8x128xf32>
    %140 = math.exp %139 : vector<8x128xf32>
    %cst_39 = arith.constant 1.000000e+00 : f32
    %141 = vector.broadcast %cst_39 : f32 to vector<8x128xf32>
    %142 = arith.addf %141, %140 : vector<8x128xf32>
    %143 = arith.divf %141, %142 : vector<8x128xf32>
    %144 = math.tanh %138 : vector<8x128xf32>
    %145 = vector.extract_strided_slice %143 {offsets = [0, 0], sizes = [8, 32], strides = [1, 1]} : vector<8x128xf32> to vector<8x32xf32>
    %146 = vector.extract_strided_slice %143 {offsets = [0, 32], sizes = [8, 32], strides = [1, 1]} : vector<8x128xf32> to vector<8x32xf32>
    %147 = vector.extract_strided_slice %144 {offsets = [0, 64], sizes = [8, 32], strides = [1, 1]} : vector<8x128xf32> to vector<8x32xf32>
    %148 = vector.extract_strided_slice %143 {offsets = [0, 96], sizes = [8, 32], strides = [1, 1]} : vector<8x128xf32> to vector<8x32xf32>
    %149 = arith.mulf %146, %131 : vector<8x32xf32>
    %150 = arith.mulf %145, %147 : vector<8x32xf32>
    %151 = arith.addf %149, %150 : vector<8x32xf32>
    %152 = math.tanh %151 : vector<8x32xf32>
    %153 = arith.mulf %148, %152 : vector<8x32xf32>
    %c7_i32 = arith.constant 7 : i32
    %154 = arith.index_cast %c7_i32 : i32 to index
    %c0_40 = arith.constant 0 : index
    %c0_41 = arith.constant 0 : index
    %155 = vector.load %arg7[%154, %c0_40, %c0_41] : memref<8x8x128xf32, #tpu.memory_space<vmem>>, vector<1x8x128xf32>
    %156 = vector.shape_cast %155 : vector<1x8x128xf32> to vector<8x128xf32>
    %cst_42 = arith.constant dense<0.000000e+00> : vector<8x128xf32>
    %157 = tpu.matmul %153, %11, %cst_42 {dimension_numbers = #tpu.dot_dimension_numbers<[1], [0], [0], [1], [0, 0, 1, 1], [], []>} : vector<8x32xf32>, vector<32x128xf32>, vector<8x128xf32> -> vector<8x128xf32>
    %158 = arith.addf %156, %157 : vector<8x128xf32>
    %159 = arith.negf %158 : vector<8x128xf32>
    %160 = math.exp %159 : vector<8x128xf32>
    %cst_43 = arith.constant 1.000000e+00 : f32
    %161 = vector.broadcast %cst_43 : f32 to vector<8x128xf32>
    %162 = arith.addf %161, %160 : vector<8x128xf32>
    %163 = arith.divf %161, %162 : vector<8x128xf32>
    %164 = math.tanh %158 : vector<8x128xf32>
    %165 = vector.extract_strided_slice %163 {offsets = [0, 0], sizes = [8, 32], strides = [1, 1]} : vector<8x128xf32> to vector<8x32xf32>
    %166 = vector.extract_strided_slice %163 {offsets = [0, 32], sizes = [8, 32], strides = [1, 1]} : vector<8x128xf32> to vector<8x32xf32>
    %167 = vector.extract_strided_slice %164 {offsets = [0, 64], sizes = [8, 32], strides = [1, 1]} : vector<8x128xf32> to vector<8x32xf32>
    %168 = vector.extract_strided_slice %163 {offsets = [0, 96], sizes = [8, 32], strides = [1, 1]} : vector<8x128xf32> to vector<8x32xf32>
    %169 = arith.mulf %166, %151 : vector<8x32xf32>
    %170 = arith.mulf %165, %167 : vector<8x32xf32>
    %171 = arith.addf %169, %170 : vector<8x32xf32>
    %172 = math.tanh %171 : vector<8x32xf32>
    %173 = arith.mulf %168, %172 : vector<8x32xf32>
    %c8_i32 = arith.constant 8 : i32
    %c0_44 = arith.constant 0 : index
    %c0_45 = arith.constant 0 : index
    %174 = vector.load %arg4[%c0_44, %c0_45] : memref<1x32xf32, #tpu.memory_space<vmem>>, vector<1x32xf32>
    %175 = vector.broadcast %174 : vector<1x32xf32> to vector<8x32xf32>
    %176 = arith.mulf %173, %175 : vector<8x32xf32>
    %cst_46 = arith.constant dense<0.000000e+00> : vector<8xf32>
    %177 = vector.multi_reduction <add>, %176, %cst_46 [1] : vector<8x32xf32> to vector<8xf32>
    %178 = vector.shape_cast %177 : vector<8xf32> to vector<8x1xf32>
    %c0_47 = arith.constant 0 : index
    %c0_48 = arith.constant 0 : index
    %179 = vector.load %arg5[%c0_47, %c0_48] : memref<1x1xf32, #tpu.memory_space<vmem>>, vector<1x1xf32>
    %180 = vector.broadcast %179 : vector<1x1xf32> to vector<8x1xf32>
    %181 = arith.addf %178, %180 : vector<8x1xf32>
    %c0_49 = arith.constant 0 : index
    %c0_50 = arith.constant 0 : index
    %182 = vector.load %arg6[%c0_49, %c0_50] : memref<8x1xf32, #tpu.memory_space<vmem>>, vector<8x1xf32>
    tpu.vector_store %arg6[%c0_49, %c0_50], %181 {strides = array<i32>} : memref<8x1xf32, #tpu.memory_space<vmem>>, vector<8x1xf32>,
    return
  }
}

</mosaic_0001>

<llo_original>
// kernel: tpu_custom_call.1
$region0: #{tpu_custom_call.1}
  #allocation0 [shape = 'u32[]', space=smem, size = 0x4, offset = 0x4, fixed_abs, tag = 'smem constant byte address 0x4 - core index']
  #allocation1 [shape = 'u32[72,128]{1,0:T(1,128)}', space=vmem, size = 0x9000, scoped, tag = 'internal scratch']
  #allocation2 [shape = 'f32[8,8,128]{2,1,0:T(8,128)}', space=vmem, size = 0x8000, scoped, tag = 'scratch operand']
  #allocation3 [shape = 'f32[1,1]{1,0:T(1,128)S(1)}', space=vmem, size = 0x200, scoped, tag = 'scoped memory for tpu_custom_call.1']
  %s0 = inlined_call_operand.vmem [shape: f32[8,8,1], index: 0, kind: input, shape index: {}]
  %s1 = inlined_call_operand.vmem [shape: f32[1,128], index: 1, kind: input, shape index: {}]
  %s2 = inlined_call_operand.vmem [shape: f32[32,128], index: 2, kind: input, shape index: {}]
  %s3 = inlined_call_operand.vmem [shape: f32[1,128], index: 3, kind: input, shape index: {}]
  %s4 = inlined_call_operand.vmem [shape: f32[1,32], index: 4, kind: input, shape index: {}]
  %s5 = inlined_call_operand.<no memory space> [shape: f32[1,1], index: 5, kind: input, shape index: {}]
  %s6 = inlined_call_operand.vmem [shape: f32[8,1], index: 6, kind: output, shape index: {}]
  %s7 = sld [smem:[#allocation0]]
  $region34: #{tpu_custom_call.1} parent=0
    _
  %s9 = ssub.s32 1, %s7
  %s10 = scalar_select 0, %s9, %s7
  %v11 = vstv %s5
  %12 = vst [vmem:[#allocation3] sm:$0x1] %v11
  // Predicated region
  $region2: #{tpu_custom_call.1} parent=0 // pred_check
    _
  $region3: #{tpu_custom_call.1} parent=0 // pred_check_branch
    %14 = sbr.rel (0) target = $region5
  $region4: #{tpu_custom_call.1} parent=0 // pred_region
    _
  $region5: #{tpu_custom_call.1} parent=0 // pred_fallthru
    _
  // Predicated region
  $region6: #{tpu_custom_call.1} parent=0 // pred_check
    _
  $region7: #{tpu_custom_call.1} parent=0 // pred_check_branch
    %16 = sbr.rel (0) target = $region9
  $region8: #{tpu_custom_call.1} parent=0 // pred_region
    _
  $region9: #{tpu_custom_call.1} parent=0 // pred_fallthru
    _
  // Predicated region
  $region10: #{tpu_custom_call.1} parent=0 // pred_check
    _
  $region11: #{tpu_custom_call.1} parent=0 // pred_check_branch
    %18 = sbr.rel (0) target = $region13
  $region12: #{tpu_custom_call.1} parent=0 // pred_region
    _
  $region13: #{tpu_custom_call.1} parent=0 // pred_fallthru
    _
  // Predicated region
  $region14: #{tpu_custom_call.1} parent=0 // pred_check
    _
  $region15: #{tpu_custom_call.1} parent=0 // pred_check_branch
    %20 = sbr.rel (0) target = $region17
  $region16: #{tpu_custom_call.1} parent=0 // pred_region
    _
  $region17: #{tpu_custom_call.1} parent=0 // pred_fallthru
    _
  // Predicated region
  $region18: #{tpu_custom_call.1} parent=0 // pred_check
    _
  $region19: #{tpu_custom_call.1} parent=0 // pred_check_branch
    %22 = sbr.rel (0) target = $region21
  $region20: #{tpu_custom_call.1} parent=0 // pred_region
    _
  $region21: #{tpu_custom_call.1} parent=0 // pred_fallthru
    _
  // Predicated region
  $region22: #{tpu_custom_call.1} parent=0 // pred_check
    _
  $region23: #{tpu_custom_call.1} parent=0 // pred_check_branch
    %24 = sbr.rel (0) target = $region25
  $region24: #{tpu_custom_call.1} parent=0 // pred_region
    _
  $region25: #{tpu_custom_call.1} parent=0 // pred_fallthru
    _
  %v25 = vld [vmem:[%s0] sm:$0xff]
  %v26 = vld [vmem:[%s0 + $0x8] sm:$0xff]
  %v27 = vld [vmem:[%s0 + $0x10] sm:$0xff]
  %v28 = vld [vmem:[%s0 + $0x18] sm:$0xff]
  %v29 = vld [vmem:[%s0 + $0x20] sm:$0xff]
  %v30 = vld [vmem:[%s0 + $0x28] sm:$0xff]
  %v31 = vld [vmem:[%s0 + $0x30] sm:$0xff]
  %v32 = vld [vmem:[%s0 + $0x38] sm:$0xff]
  %v33 = vld [vmem:[%s1] sm:$0x1]
  %35 = vset.pattern.permute.xlu0 0
  %36 = vperm.xlu0 %35, %v25
  %v37 = vpop.permute.xlu0 %36
  %40 = vset.pattern.permute.xlu0 0
  %41 = vperm.xlu0 %40, %v26
  %v42 = vpop.permute.xlu0 %41
  %45 = vset.pattern.permute.xlu0 0
  %46 = vperm.xlu0 %45, %v27
  %v47 = vpop.permute.xlu0 %46
  %50 = vset.pattern.permute.xlu0 0
  %51 = vperm.xlu0 %50, %v28
  %v52 = vpop.permute.xlu0 %51
  %55 = vset.pattern.permute.xlu0 0
  %56 = vperm.xlu0 %55, %v29
  %v57 = vpop.permute.xlu0 %56
  %60 = vset.pattern.permute.xlu0 0
  %61 = vperm.xlu0 %60, %v30
  %v62 = vpop.permute.xlu0 %61
  %65 = vset.pattern.permute.xlu0 0
  %66 = vperm.xlu0 %65, %v31
  %v67 = vpop.permute.xlu0 %66
  %70 = vset.pattern.permute.xlu0 0
  %71 = vperm.xlu0 %70, %v32
  %v72 = vpop.permute.xlu0 %71
  %v75 = vperm.slane %v33, 0
  %v77 = vmul.f32 %v37, %v75
  %v78 = vmul.f32 %v42, %v75
  %v79 = vmul.f32 %v47, %v75
  %v80 = vmul.f32 %v52, %v75
  %v81 = vmul.f32 %v57, %v75
  %v82 = vmul.f32 %v62, %v75
  %v83 = vmul.f32 %v67, %v75
  %v84 = vmul.f32 %v72, %v75
  %v85 = vld [vmem:[%s3] sm:$0x1]
  %v87 = vperm.slane %v85, 0
  %v89 = vadd.f32 %v77, %v87
  %v90 = vadd.f32 %v78, %v87
  %v91 = vadd.f32 %v79, %v87
  %v92 = vadd.f32 %v80, %v87
  %v93 = vadd.f32 %v81, %v87
  %v94 = vadd.f32 %v82, %v87
  %v95 = vadd.f32 %v83, %v87
  %v96 = vadd.f32 %v84, %v87
  %97 = vst [vmem:[#allocation2] sm:$0xff] %v89
  %98 = vst [vmem:[#allocation2 + $0x8] sm:$0xff] %v90
  %99 = vst [vmem:[#allocation2 + $0x10] sm:$0xff] %v91
  %100 = vst [vmem:[#allocation2 + $0x18] sm:$0xff] %v92
  %101 = vst [vmem:[#allocation2 + $0x20] sm:$0xff] %v93
  %102 = vst [vmem:[#allocation2 + $0x28] sm:$0xff] %v94
  %103 = vst [vmem:[#allocation2 + $0x30] sm:$0xff] %v95
  %104 = vst [vmem:[#allocation2 + $0x38] sm:$0xff] %v96
  %v105 = vld [vmem:[%s2] sm:$0xff]
  %v106 = vld [vmem:[%s2 + $0x8] sm:$0xff]
  %v107 = vld [vmem:[%s2 + $0x10] sm:$0xff]
  %v108 = vld [vmem:[%s2 + $0x18] sm:$0xff]
  %v109 = vld [vmem:[#allocation2] sm:$0xff]
  %vm110 = vcmask 261120
  %v112 = vsel %vm110, 0.0, 0
  %114 = vmatpush.msra.mxu0 0.0
  %115 = vmatpush.msra.mxu0 0.0
  %116 = vmatpush.msra.mxu0 0.0
  %117 = vmatpush.msra.mxu0 0.0
  %118 = vmatpush.msra.mxu0 0.0
  %119 = vmatpush.msra.mxu0 0.0
  %120 = vmatpush.msra.mxu0 0.0
  %121 = vmatpush.msra.mxu0 0.0
  %122 = vmatpush.msra.mxu0 0.0
  %123 = vmatpush.msra.mxu0 0.0
  %124 = vmatpush.msra.mxu0 0.0
  %125 = vmatpush.msra.mxu0 0.0
  %126 = vmatpush.msra.mxu0 %v108
  %127 = vmatpush.msra.mxu0 %v107
  %128 = vmatpush.msra.mxu0 %v106
  %129 = vmatpush.msra.mxu0 %v105
  %130 = vmatmul.f32.gmra.mxu0 %v112
  %v131 = vpop.f32.mrf.mxu0
  %v132 = vadd.f32 0.0, %v131
  %133 = vdwg.mxu0
  %v134 = vadd.f32 %v109, %v132
  %v135 = vxor.u32 %v134, 2147483648
  %v136 = vmul.f32 %v135, 1.442695
  %v137 = vpow.pop %v136
  %v138 = vadd.f32 %v137, 1.0
  %v139 = vrcp.pop %v138
  %v140 = vmul.f32 %v138, %v139
  %v141 = vsub.f32 1.0, %v140
  %v142 = vmul.f32 %v139, %v141
  %v143 = vadd.f32 %v139, %v142
  %vm144 = vweird.f32 %v138
  %vm145 = vweird.f32 %v139
  %vm146 = vmor %vm144, %vm145
  %v147 = vsel %vm146, %v139, %v143
  %v148 = vand.u32 2147483647, %v138
  %vm149 = vcmp.eq.f32.partialorder %v148, 8.507059e+37
  %v150 = vand.u32 %v138, 2147483648
  %v151 = vor.u32 1.1754944e-38, %v150
  %v152 = vsel %vm149, %v151, %v147
  %v153 = vmul.f32 1.0, %v152
  %v154 = vtanh.pop %v134
  %v155 = vmul.f32 %v153, 0.0
  %157 = vrot.lane.b32.xlu0 %v154, 64
  %v158 = vpop.permute.xlu0 %157
  %v160 = vmul.f32 %v153, %v158
  %162 = vrot.lane.b32.xlu0 %v160, 32
  %v163 = vpop.permute.xlu0 %162
  %v165 = vadd.f32 %v155, %v163
  %v166 = vtanh.pop %v165
  %168 = vrot.lane.b32.xlu0 %v166, 64
  %v169 = vpop.permute.xlu0 %168
  %v171 = vmul.f32 %v153, %v169
  %s172 = scalar_lea.vmem [#allocation2], 8
  %v173 = vld [vmem:[%s172] sm:$0xff]
  %175 = vrot.lane.b32.xlu0 %v171, 32
  %v176 = vpop.permute.xlu0 %175
  %v177 = vsel %vm110, %v176, 0
  %179 = vmatpush.msra.mxu0 0.0
  %180 = vmatpush.msra.mxu0 0.0
  %181 = vmatpush.msra.mxu0 0.0
  %182 = vmatpush.msra.mxu0 0.0
  %183 = vmatpush.msra.mxu0 0.0
  %184 = vmatpush.msra.mxu0 0.0
  %185 = vmatpush.msra.mxu0 0.0
  %186 = vmatpush.msra.mxu0 0.0
  %187 = vmatpush.msra.mxu0 0.0
  %188 = vmatpush.msra.mxu0 0.0
  %189 = vmatpush.msra.mxu0 0.0
  %190 = vmatpush.msra.mxu0 0.0
  %191 = vmatpush.msra.mxu0 %v108
  %192 = vmatpush.msra.mxu0 %v107
  %193 = vmatpush.msra.mxu0 %v106
  %194 = vmatpush.msra.mxu0 %v105
  %195 = vmatmul.f32.gmra.mxu0 %v177
  %v196 = vpop.f32.mrf.mxu0
  %v197 = vadd.f32 0.0, %v196
  %198 = vdwg.mxu0
  %v199 = vadd.f32 %v173, %v197
  %v200 = vxor.u32 %v199, 2147483648
  %v201 = vmul.f32 %v200, 1.442695
  %v202 = vpow.pop %v201
  %v203 = vadd.f32 %v202, 1.0
  %v204 = vrcp.pop %v203
  %v205 = vmul.f32 %v203, %v204
  %v206 = vsub.f32 1.0, %v205
  %v207 = vmul.f32 %v204, %v206
  %v208 = vadd.f32 %v204, %v207
  %vm209 = vweird.f32 %v203
  %vm210 = vweird.f32 %v204
  %vm211 = vmor %vm209, %vm210
  %v212 = vsel %vm211, %v204, %v208
  %v213 = vand.u32 2147483647, %v203
  %vm214 = vcmp.eq.f32.partialorder %v213, 8.507059e+37
  %v215 = vand.u32 %v203, 2147483648
  %v216 = vor.u32 1.1754944e-38, %v215
  %v217 = vsel %vm214, %v216, %v212
  %v218 = vmul.f32 1.0, %v217
  %v219 = vtanh.pop %v199
  %v220 = vmul.f32 %v218, %v165
  %222 = vrot.lane.b32.xlu0 %v219, 64
  %v223 = vpop.permute.xlu0 %222
  %v225 = vmul.f32 %v218, %v223
  %227 = vrot.lane.b32.xlu0 %v225, 32
  %v228 = vpop.permute.xlu0 %227
  %v230 = vadd.f32 %v220, %v228
  %v231 = vtanh.pop %v230
  %233 = vrot.lane.b32.xlu0 %v231, 64
  %v234 = vpop.permute.xlu0 %233
  %v236 = vmul.f32 %v218, %v234
  %s237 = scalar_lea.vmem [#allocation2], 16
  %v238 = vld [vmem:[%s237] sm:$0xff]
  %240 = vrot.lane.b32.xlu0 %v236, 32
  %v241 = vpop.permute.xlu0 %240
  %v242 = vsel %vm110, %v241, 0
  %244 = vmatpush.msra.mxu0 0.0
  %245 = vmatpush.msra.mxu0 0.0
  %246 = vmatpush.msra.mxu0 0.0
  %247 = vmatpush.msra.mxu0 0.0
  %248 = vmatpush.msra.mxu0 0.0
  %249 = vmatpush.msra.mxu0 0.0
  %250 = vmatpush.msra.mxu0 0.0
  %251 = vmatpush.msra.mxu0 0.0
  %252 = vmatpush.msra.mxu0 0.0
  %253 = vmatpush.msra.mxu0 0.0
  %254 = vmatpush.msra.mxu0 0.0
  %255 = vmatpush.msra.mxu0 0.0
  %256 = vmatpush.msra.mxu0 %v108
  %257 = vmatpush.msra.mxu0 %v107
  %258 = vmatpush.msra.mxu0 %v106
  %259 = vmatpush.msra.mxu0 %v105
  %260 = vmatmul.f32.gmra.mxu0 %v242
  %v261 = vpop.f32.mrf.mxu0
  %v262 = vadd.f32 0.0, %v261
  %263 = vdwg.mxu0
  %v264 = vadd.f32 %v238, %v262
  %v265 = vxor.u32 %v264, 2147483648
  %v266 = vmul.f32 %v265, 1.442695
  %v267 = vpow.pop %v266
  %v268 = vadd.f32 %v267, 1.0
  %v269 = vrcp.pop %v268
  %v270 = vmul.f32 %v268, %v269
  %v271 = vsub.f32 1.0, %v270
  %v272 = vmul.f32 %v269, %v271
  %v273 = vadd.f32 %v269, %v272
  %vm274 = vweird.f32 %v268
  %vm275 = vweird.f32 %v269
  %vm276 = vmor %vm274, %vm275
  %v277 = vsel %vm276, %v269, %v273
  %v278 = vand.u32 2147483647, %v268
  %vm279 = vcmp.eq.f32.partialorder %v278, 8.507059e+37
  %v280 = vand.u32 %v268, 2147483648
  %v281 = vor.u32 1.1754944e-38, %v280
  %v282 = vsel %vm279, %v281, %v277
  %v283 = vmul.f32 1.0, %v282
  %v284 = vtanh.pop %v264
  %v285 = vmul.f32 %v283, %v230
  %287 = vrot.lane.b32.xlu0 %v284, 64
  %v288 = vpop.permute.xlu0 %287
  %v290 = vmul.f32 %v283, %v288
  %292 = vrot.lane.b32.xlu0 %v290, 32
  %v293 = vpop.permute.xlu0 %292
  %v295 = vadd.f32 %v285, %v293
  %v296 = vtanh.pop %v295
  %298 = vrot.lane.b32.xlu0 %v296, 64
  %v299 = vpop.permute.xlu0 %298
  %v301 = vmul.f32 %v283, %v299
  %s302 = scalar_lea.vmem [#allocation2], 24
  %v303 = vld [vmem:[%s302] sm:$0xff]
  %305 = vrot.lane.b32.xlu0 %v301, 32
  %v306 = vpop.permute.xlu0 %305
  %v307 = vsel %vm110, %v306, 0
  %309 = vmatpush.msra.mxu0 0.0
  %310 = vmatpush.msra.mxu0 0.0
  %311 = vmatpush.msra.mxu0 0.0
  %312 = vmatpush.msra.mxu0 0.0
  %313 = vmatpush.msra.mxu0 0.0
  %314 = vmatpush.msra.mxu0 0.0
  %315 = vmatpush.msra.mxu0 0.0
  %316 = vmatpush.msra.mxu0 0.0
  %317 = vmatpush.msra.mxu0 0.0
  %318 = vmatpush.msra.mxu0 0.0
  %319 = vmatpush.msra.mxu0 0.0
  %320 = vmatpush.msra.mxu0 0.0
  %321 = vmatpush.msra.mxu0 %v108
  %322 = vmatpush.msra.mxu0 %v107
  %323 = vmatpush.msra.mxu0 %v106
  %324 = vmatpush.msra.mxu0 %v105
  %325 = vmatmul.f32.gmra.mxu0 %v307
  %v326 = vpop.f32.mrf.mxu0
  %v327 = vadd.f32 0.0, %v326
  %328 = vdwg.mxu0
  %v329 = vadd.f32 %v303, %v327
  %v330 = vxor.u32 %v329, 2147483648
  %v331 = vmul.f32 %v330, 1.442695
  %v332 = vpow.pop %v331
  %v333 = vadd.f32 %v332, 1.0
  %v334 = vrcp.pop %v333
  %v335 = vmul.f32 %v333, %v334
  %v336 = vsub.f32 1.0, %v335
  %v337 = vmul.f32 %v334, %v336
  %v338 = vadd.f32 %v334, %v337
  %vm339 = vweird.f32 %v333
  %vm340 = vweird.f32 %v334
  %vm341 = vmor %vm339, %vm340
  %v342 = vsel %vm341, %v334, %v338
  %v343 = vand.u32 2147483647, %v333
  %vm344 = vcmp.eq.f32.partialorder %v343, 8.507059e+37
  %v345 = vand.u32 %v333, 2147483648
  %v346 = vor.u32 1.1754944e-38, %v345
  %v347 = vsel %vm344, %v346, %v342
  %v348 = vmul.f32 1.0, %v347
  %v349 = vtanh.pop %v329
  %v350 = vmul.f32 %v348, %v295
  %352 = vrot.lane.b32.xlu0 %v349, 64
  %v353 = vpop.permute.xlu0 %352
  %v355 = vmul.f32 %v348, %v353
  %357 = vrot.lane.b32.xlu0 %v355, 32
  %v358 = vpop.permute.xlu0 %357
  %v360 = vadd.f32 %v350, %v358
  %v361 = vtanh.pop %v360
  %363 = vrot.lane.b32.xlu0 %v361, 64
  %v364 = vpop.permute.xlu0 %363
  %v366 = vmul.f32 %v348, %v364
  %s367 = scalar_lea.vmem [#allocation2], 32
  %v368 = vld [vmem:[%s367] sm:$0xff]
  %370 = vrot.lane.b32.xlu0 %v366, 32
  %v371 = vpop.permute.xlu0 %370
  %v372 = vsel %vm110, %v371, 0
  %374 = vmatpush.msra.mxu0 0.0
  %375 = vmatpush.msra.mxu0 0.0
  %376 = vmatpush.msra.mxu0 0.0
  %377 = vmatpush.msra.mxu0 0.0
  %378 = vmatpush.msra.mxu0 0.0
  %379 = vmatpush.msra.mxu0 0.0
  %380 = vmatpush.msra.mxu0 0.0
  %381 = vmatpush.msra.mxu0 0.0
  %382 = vmatpush.msra.mxu0 0.0
  %383 = vmatpush.msra.mxu0 0.0
  %384 = vmatpush.msra.mxu0 0.0
  %385 = vmatpush.msra.mxu0 0.0
  %386 = vmatpush.msra.mxu0 %v108
  %387 = vmatpush.msra.mxu0 %v107
  %388 = vmatpush.msra.mxu0 %v106
  %389 = vmatpush.msra.mxu0 %v105
  %390 = vmatmul.f32.gmra.mxu0 %v372
  %v391 = vpop.f32.mrf.mxu0
  %v392 = vadd.f32 0.0, %v391
  %393 = vdwg.mxu0
  %v394 = vadd.f32 %v368, %v392
  %v395 = vxor.u32 %v394, 2147483648
  %v396 = vmul.f32 %v395, 1.442695
  %v397 = vpow.pop %v396
  %v398 = vadd.f32 %v397, 1.0
  %v399 = vrcp.pop %v398
  %v400 = vmul.f32 %v398, %v399
  %v401 = vsub.f32 1.0, %v400
  %v402 = vmul.f32 %v399, %v401
  %v403 = vadd.f32 %v399, %v402
  %vm404 = vweird.f32 %v398
  %vm405 = vweird.f32 %v399
  %vm406 = vmor %vm404, %vm405
  %v407 = vsel %vm406, %v399, %v403
  %v408 = vand.u32 2147483647, %v398
  %vm409 = vcmp.eq.f32.partialorder %v408, 8.507059e+37
  %v410 = vand.u32 %v398, 2147483648
  %v411 = vor.u32 1.1754944e-38, %v410
  %v412 = vsel %vm409, %v411, %v407
  %v413 = vmul.f32 1.0, %v412
  %v414 = vtanh.pop %v394
  %v415 = vmul.f32 %v413, %v360
  %417 = vrot.lane.b32.xlu0 %v414, 64
  %v418 = vpop.permute.xlu0 %417
  %v420 = vmul.f32 %v413, %v418
  %422 = vrot.lane.b32.xlu0 %v420, 32
  %v423 = vpop.permute.xlu0 %422
  %v425 = vadd.f32 %v415, %v423
  %v426 = vtanh.pop %v425
  %428 = vrot.lane.b32.xlu0 %v426, 64
  %v429 = vpop.permute.xlu0 %428
  %v431 = vmul.f32 %v413, %v429
  %s432 = scalar_lea.vmem [#allocation2], 40
  %v433 = vld [vmem:[%s432] sm:$0xff]
  %435 = vrot.lane.b32.xlu0 %v431, 32
  %v436 = vpop.permute.xlu0 %435
  %v437 = vsel %vm110, %v436, 0
  %439 = vmatpush.msra.mxu0 0.0
  %440 = vmatpush.msra.mxu0 0.0
  %441 = vmatpush.msra.mxu0 0.0
  %442 = vmatpush.msra.mxu0 0.0
  %443 = vmatpush.msra.mxu0 0.0
  %444 = vmatpush.msra.mxu0 0.0
  %445 = vmatpush.msra.mxu0 0.0
  %446 = vmatpush.msra.mxu0 0.0
  %447 = vmatpush.msra.mxu0 0.0
  %448 = vmatpush.msra.mxu0 0.0
  %449 = vmatpush.msra.mxu0 0.0
  %450 = vmatpush.msra.mxu0 0.0
  %451 = vmatpush.msra.mxu0 %v108
  %452 = vmatpush.msra.mxu0 %v107
  %453 = vmatpush.msra.mxu0 %v106
  %454 = vmatpush.msra.mxu0 %v105
  %455 = vmatmul.f32.gmra.mxu0 %v437
  %v456 = vpop.f32.mrf.mxu0
  %v457 = vadd.f32 0.0, %v456
  %458 = vdwg.mxu0
  %v459 = vadd.f32 %v433, %v457
  %v460 = vxor.u32 %v459, 2147483648
  %v461 = vmul.f32 %v460, 1.442695
  %v462 = vpow.pop %v461
  %v463 = vadd.f32 %v462, 1.0
  %v464 = vrcp.pop %v463
  %v465 = vmul.f32 %v463, %v464
  %v466 = vsub.f32 1.0, %v465
  %v467 = vmul.f32 %v464, %v466
  %v468 = vadd.f32 %v464, %v467
  %vm469 = vweird.f32 %v463
  %vm470 = vweird.f32 %v464
  %vm471 = vmor %vm469, %vm470
  %v472 = vsel %vm471, %v464, %v468
  %v473 = vand.u32 2147483647, %v463
  %vm474 = vcmp.eq.f32.partialorder %v473, 8.507059e+37
  %v475 = vand.u32 %v463, 2147483648
  %v476 = vor.u32 1.1754944e-38, %v475
  %v477 = vsel %vm474, %v476, %v472
  %v478 = vmul.f32 1.0, %v477
  %v479 = vtanh.pop %v459
  %v480 = vmul.f32 %v478, %v425
  %482 = vrot.lane.b32.xlu0 %v479, 64
  %v483 = vpop.permute.xlu0 %482
  %v485 = vmul.f32 %v478, %v483
  %487 = vrot.lane.b32.xlu0 %v485, 32
  %v488 = vpop.permute.xlu0 %487
  %v490 = vadd.f32 %v480, %v488
  %v491 = vtanh.pop %v490
  %493 = vrot.lane.b32.xlu0 %v491, 64
  %v494 = vpop.permute.xlu0 %493
  %v496 = vmul.f32 %v478, %v494
  %s497 = scalar_lea.vmem [#allocation2], 48
  %v498 = vld [vmem:[%s497] sm:$0xff]
  %500 = vrot.lane.b32.xlu0 %v496, 32
  %v501 = vpop.permute.xlu0 %500
  %v502 = vsel %vm110, %v501, 0
  %504 = vmatpush.msra.mxu0 0.0
  %505 = vmatpush.msra.mxu0 0.0
  %506 = vmatpush.msra.mxu0 0.0
  %507 = vmatpush.msra.mxu0 0.0
  %508 = vmatpush.msra.mxu0 0.0
  %509 = vmatpush.msra.mxu0 0.0
  %510 = vmatpush.msra.mxu0 0.0
  %511 = vmatpush.msra.mxu0 0.0
  %512 = vmatpush.msra.mxu0 0.0
  %513 = vmatpush.msra.mxu0 0.0
  %514 = vmatpush.msra.mxu0 0.0
  %515 = vmatpush.msra.mxu0 0.0
  %516 = vmatpush.msra.mxu0 %v108
  %517 = vmatpush.msra.mxu0 %v107
  %518 = vmatpush.msra.mxu0 %v106
  %519 = vmatpush.msra.mxu0 %v105
  %520 = vmatmul.f32.gmra.mxu0 %v502
  %v521 = vpop.f32.mrf.mxu0
  %v522 = vadd.f32 0.0, %v521
  %523 = vdwg.mxu0
  %v524 = vadd.f32 %v498, %v522
  %v525 = vxor.u32 %v524, 2147483648
  %v526 = vmul.f32 %v525, 1.442695
  %v527 = vpow.pop %v526
  %v528 = vadd.f32 %v527, 1.0
  %v529 = vrcp.pop %v528
  %v530 = vmul.f32 %v528, %v529
  %v531 = vsub.f32 1.0, %v530
  %v532 = vmul.f32 %v529, %v531
  %v533 = vadd.f32 %v529, %v532
  %vm534 = vweird.f32 %v528
  %vm535 = vweird.f32 %v529
  %vm536 = vmor %vm534, %vm535
  %v537 = vsel %vm536, %v529, %v533
  %v538 = vand.u32 2147483647, %v528
  %vm539 = vcmp.eq.f32.partialorder %v538, 8.507059e+37
  %v540 = vand.u32 %v528, 2147483648
  %v541 = vor.u32 1.1754944e-38, %v540
  %v542 = vsel %vm539, %v541, %v537
  %v543 = vmul.f32 1.0, %v542
  %v544 = vtanh.pop %v524
  %v545 = vmul.f32 %v543, %v490
  %547 = vrot.lane.b32.xlu0 %v544, 64
  %v548 = vpop.permute.xlu0 %547
  %v550 = vmul.f32 %v543, %v548
  %552 = vrot.lane.b32.xlu0 %v550, 32
  %v553 = vpop.permute.xlu0 %552
  %v555 = vadd.f32 %v545, %v553
  %v556 = vtanh.pop %v555
  %558 = vrot.lane.b32.xlu0 %v556, 64
  %v559 = vpop.permute.xlu0 %558
  %v561 = vmul.f32 %v543, %v559
  %s562 = scalar_lea.vmem [#allocation2], 56
  %v563 = vld [vmem:[%s562] sm:$0xff]
  %565 = vrot.lane.b32.xlu0 %v561, 32
  %v566 = vpop.permute.xlu0 %565
  %v567 = vsel %vm110, %v566, 0
  %569 = vmatpush.msra.mxu0 0.0
  %570 = vmatpush.msra.mxu0 0.0
  %571 = vmatpush.msra.mxu0 0.0
  %572 = vmatpush.msra.mxu0 0.0
  %573 = vmatpush.msra.mxu0 0.0
  %574 = vmatpush.msra.mxu0 0.0
  %575 = vmatpush.msra.mxu0 0.0
  %576 = vmatpush.msra.mxu0 0.0
  %577 = vmatpush.msra.mxu0 0.0
  %578 = vmatpush.msra.mxu0 0.0
  %579 = vmatpush.msra.mxu0 0.0
  %580 = vmatpush.msra.mxu0 0.0
  %581 = vmatpush.msra.mxu0 %v108
  %582 = vmatpush.msra.mxu0 %v107
  %583 = vmatpush.msra.mxu0 %v106
  %584 = vmatpush.msra.mxu0 %v105
  %585 = vmatmul.f32.gmra.mxu0 %v567
  %v586 = vpop.f32.mrf.mxu0
  %v587 = vadd.f32 0.0, %v586
  %588 = vdwg.mxu0
  %v589 = vadd.f32 %v563, %v587
  %v590 = vxor.u32 %v589, 2147483648
  %v591 = vmul.f32 %v590, 1.442695
  %v592 = vpow.pop %v591
  %v593 = vadd.f32 %v592, 1.0
  %v594 = vrcp.pop %v593
  %v595 = vmul.f32 %v593, %v594
  %v596 = vsub.f32 1.0, %v595
  %v597 = vmul.f32 %v594, %v596
  %v598 = vadd.f32 %v594, %v597
  %vm599 = vweird.f32 %v593
  %vm600 = vweird.f32 %v594
  %vm601 = vmor %vm599, %vm600
  %v602 = vsel %vm601, %v594, %v598
  %v603 = vand.u32 2147483647, %v593
  %vm604 = vcmp.eq.f32.partialorder %v603, 8.507059e+37
  %v605 = vand.u32 %v593, 2147483648
  %v606 = vor.u32 1.1754944e-38, %v605
  %v607 = vsel %vm604, %v606, %v602
  %v608 = vmul.f32 1.0, %v607
  %v609 = vtanh.pop %v589
  %v610 = vmul.f32 %v608, %v555
  %612 = vrot.lane.b32.xlu0 %v609, 64
  %v613 = vpop.permute.xlu0 %612
  %v615 = vmul.f32 %v608, %v613
  %617 = vrot.lane.b32.xlu0 %v615, 32
  %v618 = vpop.permute.xlu0 %617
  %v620 = vadd.f32 %v610, %v618
  %v621 = vtanh.pop %v620
  %623 = vrot.lane.b32.xlu0 %v621, 64
  %v624 = vpop.permute.xlu0 %623
  %v626 = vmul.f32 %v608, %v624
  %v627 = vld [vmem:[%s4] sm:$0x1]
  %v629 = vperm.slane %v627, 0
  %630 = vrot.lane.b32.xlu0 %v629, 96
  %v631 = vpop.permute.xlu0 %630
  %v633 = vmul.f32 %v626, %v631
  %635 = vrot.lane.b32.xlu0 %v633, 32
  %v636 = vpop.permute.xlu0 %635
  %v638 = vsel %vm110, %v636, 0.0
  %639 = vadd.xlane.f32.xlu0 %v638
  %v640 = vpop.xlane.xlu0 %639
  %v641 = vld [vmem:[#allocation3] sm:$0x1]
  %v643 = vperm.slane %v641, 0
  %v645 = vadd.f32 %v640, %v643
  %vm646 = vcmask 7168
  %647 = vst.msk [vmem:[%s6] sm:$0xff] %vm646, %v645
  // Predicated region
  $region26: #{tpu_custom_call.1} parent=0 // pred_check
    _
  $region27: #{tpu_custom_call.1} parent=0 // pred_check_branch
    %649 = sbr.rel (0) target = $region29
  $region28: #{tpu_custom_call.1} parent=0 // pred_region
    _
  $region29: #{tpu_custom_call.1} parent=0 // pred_fallthru
    _
  // Predicated region
  $region30: #{tpu_custom_call.1} parent=0 // pred_check
    _
  $region31: #{tpu_custom_call.1} parent=0 // pred_check_branch
    %651 = sbr.rel (0) target = $region33
  $region32: #{tpu_custom_call.1} parent=0 // pred_region
    _
  $region33: #{tpu_custom_call.1} parent=0 // pred_fallthru
    _

</llo_original>
